<compile_context>
chip_gen: v5e
topology: v5e:2x2
jax: 0.10.0
libtpu: 0.0.40
codegen_flags: <defaults>
</compile_context>

<pallas_src>
import jax
import jax.numpy as jnp
from jax.experimental import pallas as pl
from jax.experimental.pallas import tpu as pltpu


def odefunc_kernel(adj_ref, mix_ref, alpha_ref, x_ref, x0_ref, o_ref):
    """One batch element: x_ref/x0_ref/o_ref are (N, T*F) lane-dense slabs."""
    x = x_ref[...]                                                  # (N, T*F)
    # node mixing:  adj @ x  ==  einsum('ij,jp->ip')
    xa = jnp.dot(adj_ref[...], x, preferred_element_type=jnp.float32)
    # feature + time mixing folded into one lane-dense matmul on the (t,f) axis
    xm = jnp.dot(x, mix_ref[...], preferred_element_type=jnp.float32)
    # f = sigmoid(alpha)/2 * xa - 3*x + xw + xw2 + x0
    f = alpha_ref[...] * xa - 3.0 * x + xm + x0_ref[...]
    o_ref[...] = f.astype(o_ref.dtype)


def odefunc_forward(t, x, x0, adj, alpha, w, d, w2, d2):
    """x, x0: (B, N, T, F); adj: (N, N); alpha: (N,); w,d: (F,F),(F,); w2,d2: (T,T),(T,)."""
    del t  # the ODE time is unused by the PyTorch forward
    B, N, T, F = x.shape
    TF = T * F

    # --- parameter-only preprocessing (tiny; mirrors the PyTorch lines that touch
    #     only parameters, never the data-sized tensor x) ------------------------
    alpha_half = (jax.nn.sigmoid(alpha) * 0.5).astype(x.dtype).reshape(N, 1)
    w_eff = (w * jnp.clip(d, 0.0, 1.0)) @ w.T              # (F, F)
    w2_eff = (w2 * jnp.clip(d2, 0.0, 1.0)) @ w2.T          # (T, T)
    # Fold both small mixers into ONE matrix acting on the flattened (t, f) axis:
    #   x2d @ kron(I_T, w_eff)  == einsum('...tf,fg->...tg', x, w_eff)   (feature mix)
    #   x2d @ kron(w2_eff, I_F) == einsum('...tf,tm->...mf', x, w2_eff)  (time mix)
    mix = (jnp.kron(jnp.eye(T, dtype=x.dtype), w_eff)
           + jnp.kron(w2_eff, jnp.eye(F, dtype=x.dtype))).astype(x.dtype)  # (TF, TF)

    # --- lane-dense layout via contiguous reshapes only (no transposes) ---------
    x2d = x.reshape(B, N, TF)
    x02d = x0.reshape(B, N, TF)

    out2d = pl.pallas_call(
        odefunc_kernel,
        out_shape=jax.ShapeDtypeStruct((B, N, TF), x.dtype),
        grid_spec=pltpu.PrefetchScalarGridSpec(
            num_scalar_prefetch=0,
            grid=(B,),
            in_specs=[
                pl.BlockSpec((N, N), lambda b: (0, 0)),        # adj        (resident)
                pl.BlockSpec((TF, TF), lambda b: (0, 0)),      # mix matrix (resident)
                pl.BlockSpec((N, 1), lambda b: (0, 0)),        # sigmoid(alpha)/2 (resident)
                pl.BlockSpec((pl.Squeezed(), N, TF), lambda b: (b, 0, 0)),   # x slab
                pl.BlockSpec((pl.Squeezed(), N, TF), lambda b: (b, 0, 0)),   # x0 slab
            ],
            out_specs=pl.BlockSpec((pl.Squeezed(), N, TF), lambda b: (b, 0, 0)),
        ),
        compiler_params=pltpu.CompilerParams(dimension_semantics=("parallel",)),
    )(adj, mix, alpha_half, x2d, x02d)

    # back to the PyTorch (B, N, T, F) axis order — pure reshape, no data movement
    return out2d.reshape(B, N, T, F)


if __name__ == "__main__":
    # batch, nodes (adj.shape[1]), temporal_dim, feature_dim  -> T*F = 384 (lane-dense)
    B, N, T, F = 2, 16, 12, 32

    key = jax.random.PRNGKey(0)
    ks = jax.random.split(key, 8)

    # deterministic normalized adjacency
    A = jax.random.uniform(ks[0], (N, N), jnp.float32)
    adj = A / jnp.sum(A, axis=1, keepdims=True)

    # parameters perturbed around the module's init so every term is exercised
    alpha = 0.8 + 0.1 * jax.random.normal(ks[1], (N,), jnp.float32)
    w = jnp.eye(F, dtype=jnp.float32) + 0.1 * jax.random.normal(ks[2], (F, F), jnp.float32)
    d = jax.random.uniform(ks[3], (F,), jnp.float32, minval=-0.2, maxval=1.2)   # clamp active
    w2 = jnp.eye(T, dtype=jnp.float32) + 0.1 * jax.random.normal(ks[4], (T, T), jnp.float32)
    d2 = jax.random.uniform(ks[5], (T,), jnp.float32, minval=-0.2, maxval=1.2)

    x = jax.random.normal(ks[6], (B, N, T, F), jnp.float32)
    x0 = jax.random.normal(ks[7], (B, N, T, F), jnp.float32)   # self.x0 set before odeint

    out = jax.block_until_ready(odefunc_forward(0.0, x, x0, adj, alpha, w, d, w2, d2))

    # pure-JAX reference (same ops as the PyTorch forward)
    hp = jax.lax.Precision.HIGHEST
    alpha_b = jax.nn.sigmoid(alpha)[None, :, None, None]
    xa = jnp.einsum('ij,kjlm->kilm', adj, x, precision=hp)
    w_eff = (w * jnp.clip(d, 0.0, 1.0)) @ w.T
    xw = jnp.einsum('ijkl,lm->ijkm', x, w_eff, precision=hp)
    w2_eff = (w2 * jnp.clip(d2, 0.0, 1.0)) @ w2.T
    xw2 = jnp.einsum('ijkl,km->ijml', x, w2_eff, precision=hp)
    ref = alpha_b / 2.0 * xa - x + xw - x + xw2 - x + x0

    assert out.shape == (B, N, T, F), out.shape
    max_err = float(jnp.max(jnp.abs(out - ref)))
    assert jnp.allclose(out, ref, atol=1e-3, rtol=1e-3), max_err
    print("KERNEL_OK")
</pallas_src>

<mosaic_0001>
module attributes {stable_mosaic.version = 11 : i64} {
  func.func @odefunc_kernel(%arg0: i32, %arg1: memref<16x16xf32, #tpu.memory_space<vmem>>, %arg2: memref<384x384xf32, #tpu.memory_space<vmem>>, %arg3: memref<16x1xf32, #tpu.memory_space<vmem>>, %arg4: memref<1x16x384xf32, #tpu.memory_space<vmem>>, %arg5: memref<1x16x384xf32, #tpu.memory_space<vmem>>, %arg6: memref<1x16x384xf32, #tpu.memory_space<vmem>>) attributes {dimension_semantics = [#tpu.dimension_semantics<parallel>], iteration_bounds = array<i64: 2>, scalar_prefetch = 0 : i64, scratch_operands = 0 : i64, tpu.core_type = #tpu.core_type<tc>, window_params = [{pipeline_mode = #tpu.pipeline_mode<synchronous>, transform_indices = @transform_0, window_bounds = array<i64: 16, 16>}, {pipeline_mode = #tpu.pipeline_mode<synchronous>, transform_indices = @transform_1, window_bounds = array<i64: 384, 384>}, {pipeline_mode = #tpu.pipeline_mode<synchronous>, transform_indices = @transform_2, window_bounds = array<i64: 16, 1>}, {transform_indices = @transform_3, window_bounds = array<i64: 1, 16, 384>}, {transform_indices = @transform_4, window_bounds = array<i64: 1, 16, 384>}, {transform_indices = @transform_5, window_bounds = array<i64: 1, 16, 384>}]} {
    %c0 = arith.constant 0 : index
    %c0_0 = arith.constant 0 : index
    %c0_1 = arith.constant 0 : index
    %0 = vector.load %arg4[%c0, %c0_0, %c0_1] : memref<1x16x384xf32, #tpu.memory_space<vmem>>, vector<1x16x384xf32>
    %1 = vector.shape_cast %0 : vector<1x16x384xf32> to vector<16x384xf32>
    %c0_2 = arith.constant 0 : index
    %c0_3 = arith.constant 0 : index
    %2 = vector.load %arg1[%c0_2, %c0_3] : memref<16x16xf32, #tpu.memory_space<vmem>>, vector<16x16xf32>
    %cst = arith.constant dense<0.000000e+00> : vector<16x384xf32>
    %3 = tpu.matmul %2, %1, %cst {dimension_numbers = #tpu.dot_dimension_numbers<[1], [0], [0], [1], [0, 0, 1, 1], [], []>} : vector<16x16xf32>, vector<16x384xf32>, vector<16x384xf32> -> vector<16x384xf32>
    %c0_4 = arith.constant 0 : index
    %c0_5 = arith.constant 0 : index
    %4 = vector.load %arg2[%c0_4, %c0_5] : memref<384x384xf32, #tpu.memory_space<vmem>>, vector<384x384xf32>
    %cst_6 = arith.constant dense<0.000000e+00> : vector<16x384xf32>
    %5 = tpu.matmul %1, %4, %cst_6 {dimension_numbers = #tpu.dot_dimension_numbers<[1], [0], [0], [1], [0, 0, 1, 1], [], []>} : vector<16x384xf32>, vector<384x384xf32>, vector<16x384xf32> -> vector<16x384xf32>
    %c0_7 = arith.constant 0 : index
    %c0_8 = arith.constant 0 : index
    %6 = vector.load %arg3[%c0_7, %c0_8] : memref<16x1xf32, #tpu.memory_space<vmem>>, vector<16x1xf32>
    %7 = vector.broadcast %6 : vector<16x1xf32> to vector<16x384xf32>
    %8 = arith.mulf %7, %3 : vector<16x384xf32>
    %cst_9 = arith.constant 3.000000e+00 : f32
    %9 = vector.broadcast %cst_9 : f32 to vector<16x384xf32>
    %10 = arith.mulf %9, %1 : vector<16x384xf32>
    %11 = arith.subf %8, %10 : vector<16x384xf32>
    %12 = arith.addf %11, %5 : vector<16x384xf32>
    %c0_10 = arith.constant 0 : index
    %c0_11 = arith.constant 0 : index
    %c0_12 = arith.constant 0 : index
    %13 = vector.load %arg5[%c0_10, %c0_11, %c0_12] : memref<1x16x384xf32, #tpu.memory_space<vmem>>, vector<1x16x384xf32>
    %14 = vector.shape_cast %13 : vector<1x16x384xf32> to vector<16x384xf32>
    %15 = arith.addf %12, %14 : vector<16x384xf32>
    %c0_13 = arith.constant 0 : index
    %c0_14 = arith.constant 0 : index
    %c0_15 = arith.constant 0 : index
    %16 = vector.load %arg6[%c0_13, %c0_14, %c0_15] : memref<1x16x384xf32, #tpu.memory_space<vmem>>, vector<1x16x384xf32>
    %17 = vector.shape_cast %16 : vector<1x16x384xf32> to vector<16x384xf32>
    %18 = vector.shape_cast %15 : vector<16x384xf32> to vector<1x16x384xf32>
    tpu.vector_store %arg6[%c0_13, %c0_14, %c0_15], %18 {strides = array<i32>} : memref<1x16x384xf32, #tpu.memory_space<vmem>>, vector<1x16x384xf32>,
    return
  }
  func.func @transform_0(%arg0: i32) -> (i32, i32) {
    %c0_i32 = arith.constant 0 : i32
    %c0_i32_0 = arith.constant 0 : i32
    %c0_i32_1 = arith.constant 0 : i32
    return %c0_i32, %c0_i32_0 : i32, i32
  }
  func.func @transform_1(%arg0: i32) -> (i32, i32) {
    %c0_i32 = arith.constant 0 : i32
    %c0_i32_0 = arith.constant 0 : i32
    %c0_i32_1 = arith.constant 0 : i32
    return %c0_i32, %c0_i32_0 : i32, i32
  }
  func.func @transform_2(%arg0: i32) -> (i32, i32) {
    %c0_i32 = arith.constant 0 : i32
    %c0_i32_0 = arith.constant 0 : i32
    %c0_i32_1 = arith.constant 0 : i32
    return %c0_i32, %c0_i32_0 : i32, i32
  }
  func.func @transform_3(%arg0: i32) -> (i32, i32, i32) {
    %c0_i32 = arith.constant 0 : i32
    %c0_i32_0 = arith.constant 0 : i32
    %c0_i32_1 = arith.constant 0 : i32
    return %arg0, %c0_i32, %c0_i32_0 : i32, i32, i32
  }
  func.func @transform_4(%arg0: i32) -> (i32, i32, i32) {
    %c0_i32 = arith.constant 0 : i32
    %c0_i32_0 = arith.constant 0 : i32
    %c0_i32_1 = arith.constant 0 : i32
    return %arg0, %c0_i32, %c0_i32_0 : i32, i32, i32
  }
  func.func @transform_5(%arg0: i32) -> (i32, i32, i32) {
    %c0_i32 = arith.constant 0 : i32
    %c0_i32_0 = arith.constant 0 : i32
    %c0_i32_1 = arith.constant 0 : i32
    return %arg0, %c0_i32, %c0_i32_0 : i32, i32, i32
  }
}

</mosaic_0001>

<llo_original>
// kernel: tpu_custom_call.1
$region0: #{tpu_custom_call.1}
  #allocation0 [shape = 'u32[]', space=smem, size = 0x4, offset = 0x4, fixed_abs, tag = 'smem constant byte address 0x4 - core index']
  #allocation1 [shape = 'u32[72,128]{1,0:T(1,128)}', space=vmem, size = 0x9000, scoped, tag = 'internal scratch']
  %s0 = inlined_call_operand.vmem [shape: f32[16,16], index: 0, kind: input, shape index: {}]
  %s1 = inlined_call_operand.hbm [shape: f32[384,384], index: 1, kind: input, shape index: {}]
  %s2 = inlined_call_operand.vmem [shape: f32[16,1], index: 2, kind: input, shape index: {}]
  %s3 = inlined_call_operand.hbm [shape: f32[2,16,384], index: 3, kind: input, shape index: {}]
  %s4 = inlined_call_operand.hbm [shape: f32[2,16,384], index: 4, kind: input, shape index: {}]
  %s5 = inlined_call_operand.hbm [shape: f32[2,16,384], index: 5, kind: output, shape index: {}]
  %s6 = sld [smem:[#allocation0]]
  $region65: #{tpu_custom_call.1} parent=0
    _
  %s8 = ssub.s32 1, %s6
  %s9 = scalar_select 0, %s8, %s6
  $region1: #{tpu_custom_call.1} parent=0
    #allocation2 [shape = 'u8[589824]{0}', space=vmem, size = 0x90000, scoped, tag = 'input window, operand 1, single buffered']
    #allocation3 [shape = 's32[2]{0}', space=sflag, size = 0x8, scoped, tag = 'scoped memory for tpu_custom_call.1']
    #allocation4 [shape = 's32[2]{0}', space=sflag, size = 0x8, scoped, tag = 'scoped memory for tpu_custom_call.1']
    #allocation5 [shape = 'u8[49152]{0}', space=vmem, size = 0xc000, scoped, tag = 'input window, operand 3']
    #allocation6 [shape = 's32[2]{0}', space=sflag, size = 0x8, scoped, tag = 'scoped memory for tpu_custom_call.1']
    #allocation7 [shape = 'u8[49152]{0}', space=vmem, size = 0xc000, scoped, tag = 'input window, operand 4']
    #allocation8 [shape = 'u8[49152]{0}', space=vmem, size = 0xc000, scoped, tag = 'output window, operand 0']
    %10 = vsyncpa [#allocation3], 0
    %11 = vsyncpa [#allocation6], 0
    %s12 = scalar_lea.sflag [#allocation6], 1
    %13 = vsyncpa %s12, 0
    %14 = vsyncpa [#allocation4], 0
    %s15 = scalar_lea.sflag [#allocation4], 1
    %16 = vsyncpa %s15, 0
    loop: start=0, step=1, limit=4
    $region2: #{tpu_custom_call.1} parent=1 // loop_pre_header
      _
    $region3: #{tpu_custom_call.1} parent=1 // loop_header
      %s18 = sphi 0, %s22
      %p19 = scmp.ge.s32.totalorder %s18, 4
      %s26 = sphi 0, %s26
      %s28 = sphi 0, %s26
      %s29 = sphi 0, %s28
      %s43 = sphi 0, %s29
      %s47 = sphi 0, %s47
      %s49 = sphi 0, %s47
      %s50 = sphi 0, %s49
      %s64 = sphi 0, %s50
      %s68 = sphi 0, %s68
      %s70 = sphi 0, %s68
      %s71 = sphi 0, %s70
      %s85 = sphi 0, %s71
      %s91 = sphi 0, %s93
      %s94 = sphi 0, %s91
      %s95 = sphi 0, %s94
      %s111 = sphi 0, %s95
      %s117 = sphi 0, %s119
      %s120 = sphi 0, %s117
      %s121 = sphi 0, %s120
      %s137 = sphi 0, %s121
      %s143 = sphi 0, %s145
      %s146 = sphi 0, %s143
      %s147 = sphi 0, %s146
      %s163 = sphi 0, %s147
    $region4: #{tpu_custom_call.1} parent=1 // loop_header_branch
      %21 = sbr.rel (%p19) target = $region8
    $region5: #{tpu_custom_call.1} parent=1 // loop_body
      %s23 = ssub.s32 %s18, 1
      %s24 = ssub.s32 %s18, 2
      %s25 = sadd.s32 %s18, 1
      %s27 = sadd.s32 %s26, 1
      %p30 = scmp.eq.s32.totalorder %s18, 1
      %p31 = scmp.ne.s32.totalorder %s26, %s28
      %p32 = scmp.eq.s32.totalorder %s18, 0
      %p33 = por %p31, %p32
      %p34 = scmp.ne.s32.totalorder %s26, %s28
      %p35 = scmp.eq.s32.totalorder %s23, 1
      %p36 = por %p34, %p35
      %p37 = scmp.ne.s32.totalorder %s28, %s29
      %p38 = scmp.eq.s32.totalorder %s23, 0
      %p39 = por %p37, %p38
      %p40 = scmp.ne.s32.totalorder %s28, %s29
      %p41 = scmp.eq.s32.totalorder %s24, 1
      %p42 = por %p40, %p41
      %p44 = scmp.ne.s32.totalorder %s29, %s43
      %p45 = scmp.eq.s32.totalorder %s24, 0
      %p46 = por %p44, %p45
      %s48 = sadd.s32 %s47, 1
      %p51 = scmp.eq.s32.totalorder %s18, 1
      %p52 = scmp.ne.s32.totalorder %s47, %s49
      %p53 = scmp.eq.s32.totalorder %s18, 0
      %p54 = por %p52, %p53
      %p55 = scmp.ne.s32.totalorder %s47, %s49
      %p56 = scmp.eq.s32.totalorder %s23, 1
      %p57 = por %p55, %p56
      %p58 = scmp.ne.s32.totalorder %s49, %s50
      %p59 = scmp.eq.s32.totalorder %s23, 0
      %p60 = por %p58, %p59
      %p61 = scmp.ne.s32.totalorder %s49, %s50
      %p62 = scmp.eq.s32.totalorder %s24, 1
      %p63 = por %p61, %p62
      %p65 = scmp.ne.s32.totalorder %s50, %s64
      %p66 = scmp.eq.s32.totalorder %s24, 0
      %p67 = por %p65, %p66
      %s69 = sadd.s32 %s68, 1
      %p72 = scmp.eq.s32.totalorder %s18, 1
      %p73 = scmp.ne.s32.totalorder %s68, %s70
      %p74 = scmp.eq.s32.totalorder %s18, 0
      %p75 = por %p73, %p74
      %p76 = scmp.ne.s32.totalorder %s68, %s70
      %p77 = scmp.eq.s32.totalorder %s23, 1
      %p78 = por %p76, %p77
      %p79 = scmp.ne.s32.totalorder %s70, %s71
      %p80 = scmp.eq.s32.totalorder %s23, 0
      %p81 = por %p79, %p80
      %p82 = scmp.ne.s32.totalorder %s70, %s71
      %p83 = scmp.eq.s32.totalorder %s24, 1
      %p84 = por %p82, %p83
      %p86 = scmp.ne.s32.totalorder %s71, %s85
      %p87 = scmp.eq.s32.totalorder %s24, 0
      %p88 = por %p86, %p87
      %s89 = ssub.s32 %s18, %s25
      %p90 = scmp.eq.s32.totalorder %s89, 0
      %s92 = sadd.s32 %s91, 1
      %s93 = scalar_select %p90, %s91, %s92
      %p96 = pneg %p90
      %p97 = scmp.eq.s32.totalorder %s18, 1
      %p98 = por %p96, %p97
      %p99 = scmp.ne.s32.totalorder %s91, %s94
      %p100 = scmp.eq.s32.totalorder %s18, 0
      %p101 = por %p99, %p100
      %p102 = scmp.ne.s32.totalorder %s91, %s94
      %p103 = scmp.eq.s32.totalorder %s23, 1
      %p104 = por %p102, %p103
      %p105 = scmp.ne.s32.totalorder %s94, %s95
      %p106 = scmp.eq.s32.totalorder %s23, 0
      %p107 = por %p105, %p106
      %p108 = scmp.ne.s32.totalorder %s94, %s95
      %p109 = scmp.eq.s32.totalorder %s24, 1
      %p110 = por %p108, %p109
      %p112 = scmp.ne.s32.totalorder %s95, %s111
      %p113 = scmp.eq.s32.totalorder %s24, 0
      %p114 = por %p112, %p113
      %s115 = ssub.s32 %s18, %s25
      %p116 = scmp.eq.s32.totalorder %s115, 0
      %s118 = sadd.s32 %s117, 1
      %s119 = scalar_select %p116, %s117, %s118
      %p122 = pneg %p116
      %p123 = scmp.eq.s32.totalorder %s18, 1
      %p124 = por %p122, %p123
      %p125 = scmp.ne.s32.totalorder %s117, %s120
      %p126 = scmp.eq.s32.totalorder %s18, 0
      %p127 = por %p125, %p126
      %p128 = scmp.ne.s32.totalorder %s117, %s120
      %p129 = scmp.eq.s32.totalorder %s23, 1
      %p130 = por %p128, %p129
      %p131 = scmp.ne.s32.totalorder %s120, %s121
      %p132 = scmp.eq.s32.totalorder %s23, 0
      %p133 = por %p131, %p132
      %p134 = scmp.ne.s32.totalorder %s120, %s121
      %p135 = scmp.eq.s32.totalorder %s24, 1
      %p136 = por %p134, %p135
      %p138 = scmp.ne.s32.totalorder %s121, %s137
      %p139 = scmp.eq.s32.totalorder %s24, 0
      %p140 = por %p138, %p139
      %s141 = ssub.s32 %s18, %s25
      %p142 = scmp.eq.s32.totalorder %s141, 0
      %s144 = sadd.s32 %s143, 1
      %s145 = scalar_select %p142, %s143, %s144
      %p148 = pneg %p142
      %p149 = scmp.eq.s32.totalorder %s18, 1
      %p150 = por %p148, %p149
      %p151 = scmp.ne.s32.totalorder %s143, %s146
      %p152 = scmp.eq.s32.totalorder %s18, 0
      %p153 = por %p151, %p152
      %p154 = scmp.ne.s32.totalorder %s143, %s146
      %p155 = scmp.eq.s32.totalorder %s23, 1
      %p156 = por %p154, %p155
      %p157 = scmp.ne.s32.totalorder %s146, %s147
      %p158 = scmp.eq.s32.totalorder %s23, 0
      %p159 = por %p157, %p158
      %p160 = scmp.ne.s32.totalorder %s146, %s147
      %p161 = scmp.eq.s32.totalorder %s24, 1
      %p162 = por %p160, %p161
      %p164 = scmp.ne.s32.totalorder %s147, %s163
      %p165 = scmp.eq.s32.totalorder %s24, 0
      %p166 = por %p164, %p165
      %p167 = scmp.le.s32.totalorder 1, %s18
      %p168 = scmp.lt.s32.totalorder %s18, 3
      %p169 = pnand %p167, %p168
      %p170 = pneg %p169
      // Predicated region
      $region9: #{tpu_custom_call.1} parent=5 // pred_check
        _
      $region10: #{tpu_custom_call.1} parent=5 // pred_check_branch
        %172 = sbr.rel (%p169) target = $region12
      $region11: #{tpu_custom_call.1} parent=5 // pred_region
        %s173 = ssub.s32 %s18, 1
        // Predicated region
        $region13: #{tpu_custom_call.1} parent=11 // pred_check
          %p174 = pneg %p39
        $region14: #{tpu_custom_call.1} parent=11 // pred_check_branch
          %176 = sbr.rel (%p174) target = $region16
        $region15: #{tpu_custom_call.1} parent=11 // pred_region
          _
        $region16: #{tpu_custom_call.1} parent=11 // pred_fallthru
          _
        // Predicated region
        $region17: #{tpu_custom_call.1} parent=11 // pred_check
          %p177 = pneg %p60
        $region18: #{tpu_custom_call.1} parent=11 // pred_check_branch
          %179 = sbr.rel (%p177) target = $region20
        $region19: #{tpu_custom_call.1} parent=11 // pred_region
          %181 = vsyncadd [#allocation3], 0
          %s182 = sshll.u32 %s1, 4
          %s183 = int_to_ptr.hbm [resolvable:$true] %s182
          %s184 = sshll.u32 [#allocation2], 4
          %s185 = int_to_ptr.vmem [resolvable:$true] %s184
          %190 = dma.hbm_to_vmem [thread:$0]  %s183, 18432, %s185, [#allocation3], 384, 384, 24
        $region20: #{tpu_custom_call.1} parent=11 // pred_fallthru
          _
        // Predicated region
        $region21: #{tpu_custom_call.1} parent=11 // pred_check
          %p191 = pneg %p81
        $region22: #{tpu_custom_call.1} parent=11 // pred_check_branch
          %193 = sbr.rel (%p191) target = $region24
        $region23: #{tpu_custom_call.1} parent=11 // pred_region
          _
        $region24: #{tpu_custom_call.1} parent=11 // pred_fallthru
          _
      $region12: #{tpu_custom_call.1} parent=5 // pred_fallthru
        _
      %p194 = scmp.lt.s32.totalorder %s18, 2
      // Predicated region
      $region25: #{tpu_custom_call.1} parent=5 // pred_check
        %p195 = pneg %p194
      $region26: #{tpu_custom_call.1} parent=5 // pred_check_branch
        %197 = sbr.rel (%p195) target = $region28
      $region27: #{tpu_custom_call.1} parent=5 // pred_region
        // Predicated region
        $region29: #{tpu_custom_call.1} parent=27 // pred_check
          %p198 = pneg %p101
        $region30: #{tpu_custom_call.1} parent=27 // pred_check_branch
          %200 = sbr.rel (%p198) target = $region32
        $region31: #{tpu_custom_call.1} parent=27 // pred_region
          %s201 = sand.u32 %s18, 1
          %s202 = scalar_lea.sflag [#allocation6], %s201
          %s203 = sand.u32 %s91, 1
          %s204 = smul.addr %s203, 48
          %s205 = scalar_lea.vmem [#allocation5], %s204
          %207 = vsyncadd %s202, 0
          %s208 = smul.addr %s18, 6
          %s209 = smul.addr %s208, 8
          %s210 = scalar_lea.hbm %s3, %s209
          %s211 = sshll.u32 %s210, 4
          %s212 = int_to_ptr.hbm [resolvable:$true] %s211
          %s213 = sshll.u32 %s205, 4
          %s214 = int_to_ptr.vmem [resolvable:$true] %s213
          %219 = dma.hbm_to_vmem [thread:$0]  %s212, 768, %s214, %s202, 384, 384, 24
        $region32: #{tpu_custom_call.1} parent=27 // pred_fallthru
          _
        // Predicated region
        $region33: #{tpu_custom_call.1} parent=27 // pred_check
          %p220 = pneg %p127
        $region34: #{tpu_custom_call.1} parent=27 // pred_check_branch
          %222 = sbr.rel (%p220) target = $region36
        $region35: #{tpu_custom_call.1} parent=27 // pred_region
          %s223 = sand.u32 %s18, 1
          %s224 = scalar_lea.sflag [#allocation6], %s223
          %s225 = sand.u32 %s117, 1
          %s226 = smul.addr %s225, 48
          %s227 = scalar_lea.vmem [#allocation7], %s226
          %229 = vsyncadd %s224, 0
          %s230 = smul.addr %s18, 6
          %s231 = smul.addr %s230, 8
          %s232 = scalar_lea.hbm %s4, %s231
          %s233 = sshll.u32 %s232, 4
          %s234 = int_to_ptr.hbm [resolvable:$true] %s233
          %s235 = sshll.u32 %s227, 4
          %s236 = int_to_ptr.vmem [resolvable:$true] %s235
          %241 = dma.hbm_to_vmem [thread:$0]  %s234, 768, %s236, %s224, 384, 384, 24
        $region36: #{tpu_custom_call.1} parent=27 // pred_fallthru
          _
      $region28: #{tpu_custom_call.1} parent=5 // pred_fallthru
        _
      %p242 = scmp.le.s32.totalorder 1, %s18
      %p243 = scmp.lt.s32.totalorder %s18, 3
      %p244 = pnand %p242, %p243
      %p245 = pneg %p244
      // Predicated region
      $region37: #{tpu_custom_call.1} parent=5 // pred_check
        _
      $region38: #{tpu_custom_call.1} parent=5 // pred_check_branch
        %247 = sbr.rel (%p244) target = $region40
      $region39: #{tpu_custom_call.1} parent=5 // pred_region
        %s248 = ssub.s32 %s18, 1
        // Predicated region
        $region41: #{tpu_custom_call.1} parent=39 // pred_check
          %p249 = pneg %p60
        $region42: #{tpu_custom_call.1} parent=39 // pred_check_branch
          %251 = sbr.rel (%p249) target = $region44
        $region43: #{tpu_custom_call.1} parent=39 // pred_region
          %253 = dma.done [#allocation3], 18432
        $region44: #{tpu_custom_call.1} parent=39 // pred_fallthru
          _
        %s254 = sand.u32 %s23, 1
        %s255 = scalar_lea.sflag [#allocation6], %s254
        %s256 = sand.u32 %s94, 1
        %s257 = smul.addr %s256, 48
        %s258 = scalar_lea.vmem [#allocation5], %s257
        // Predicated region
        $region45: #{tpu_custom_call.1} parent=39 // pred_check
          %p259 = pneg %p107
        $region46: #{tpu_custom_call.1} parent=39 // pred_check_branch
          %261 = sbr.rel (%p259) target = $region48
        $region47: #{tpu_custom_call.1} parent=39 // pred_region
          %263 = dma.done %s255, 768
        $region48: #{tpu_custom_call.1} parent=39 // pred_fallthru
          _
        %s264 = sand.u32 %s23, 1
        %s265 = scalar_lea.sflag [#allocation6], %s264
        %s266 = sand.u32 %s120, 1
        %s267 = smul.addr %s266, 48
        %s268 = scalar_lea.vmem [#allocation7], %s267
        // Predicated region
        $region49: #{tpu_custom_call.1} parent=39 // pred_check
          %p269 = pneg %p133
        $region50: #{tpu_custom_call.1} parent=39 // pred_check_branch
          %271 = sbr.rel (%p269) target = $region52
        $region51: #{tpu_custom_call.1} parent=39 // pred_region
          %273 = dma.done %s265, 768
        $region52: #{tpu_custom_call.1} parent=39 // pred_fallthru
          _
        %p274 = pneg %p39
        %p275 = pneg %p36
        %p276 = pneg %p60
        %p277 = pneg %p57
        %p278 = pneg %p81
        %p279 = pneg %p78
        %s280 = sand.u32 %s23, 1
        %s281 = scalar_lea.sflag [#allocation6], %s280
        %s282 = sand.u32 %s94, 1
        %s283 = smul.addr %s282, 48
        %s284 = scalar_lea.vmem [#allocation5], %s283
        %p285 = pneg %p107
        %p286 = pneg %p104
        %s287 = sand.u32 %s23, 1
        %s288 = scalar_lea.sflag [#allocation6], %s287
        %s289 = sand.u32 %s120, 1
        %s290 = smul.addr %s289, 48
        %s291 = scalar_lea.vmem [#allocation7], %s290
        %p292 = pneg %p133
        %p293 = pneg %p130
        %p294 = pneg %p159
        %p295 = pneg %p156
        %s296 = sand.u32 %s146, 1
        %s297 = scalar_lea.sflag [#allocation4], %s296
        %s298 = sand.u32 %s146, 1
        %s299 = smul.addr %s298, 48
        %s300 = scalar_lea.vmem [#allocation8], %s299
        %v301 = vld [vmem:[%s258] sm:$0xff]
        %v302 = vld [vmem:[%s258 + $0x8] sm:$0xff]
        %v303 = vld [vmem:[%s258 + $0x10] sm:$0xff]
        %v304 = vld [vmem:[%s258 + $0x18] sm:$0xff]
        %v305 = vld [vmem:[%s258 + $0x20] sm:$0xff]
        %v306 = vld [vmem:[%s258 + $0x28] sm:$0xff]
        %v307 = vld [vmem:[%s0] sm:$0xff]
        %v308 = vld [vmem:[%s0 + $0x8] sm:$0xff]
        %vm309 = vcmask 130048
        %v311 = vsel %vm309, %v307, 0
        %v314 = vsel %vm309, %v308, 0
        %316 = vmatpush.msra.mxu0 0.0
        %317 = vmatpush.msra.mxu0 0.0
        %318 = vmatpush.msra.mxu0 0.0
        %319 = vmatpush.msra.mxu0 0.0
        %320 = vmatpush.msra.mxu0 0.0
        %321 = vmatpush.msra.mxu0 0.0
        %322 = vmatpush.msra.mxu0 0.0
        %323 = vmatpush.msra.mxu0 0.0
        %324 = vmatpush.msra.mxu0 0.0
        %325 = vmatpush.msra.mxu0 0.0
        %326 = vmatpush.msra.mxu0 0.0
        %327 = vmatpush.msra.mxu0 0.0
        %328 = vmatpush.msra.mxu0 0.0
        %329 = vmatpush.msra.mxu0 0.0
        %330 = vmatpush.msra.mxu0 %v304
        %331 = vmatpush.msra.mxu0 %v301
        %332 = vmatmul.f32.gmra.mxu0 %v311
        %v333 = vpop.f32.mrf.mxu0
        %v334 = vadd.f32 0.0, %v333
        %335 = vmatmul.f32.gmra.mxu0 %v314
        %v336 = vpop.f32.mrf.mxu0
        %v337 = vadd.f32 0.0, %v336
        %338 = vdwg.mxu0
        %339 = vmatpush.msra.mxu0 0.0
        %340 = vmatpush.msra.mxu0 0.0
        %341 = vmatpush.msra.mxu0 0.0
        %342 = vmatpush.msra.mxu0 0.0
        %343 = vmatpush.msra.mxu0 0.0
        %344 = vmatpush.msra.mxu0 0.0
        %345 = vmatpush.msra.mxu0 0.0
        %346 = vmatpush.msra.mxu0 0.0
        %347 = vmatpush.msra.mxu0 0.0
        %348 = vmatpush.msra.mxu0 0.0
        %349 = vmatpush.msra.mxu0 0.0
        %350 = vmatpush.msra.mxu0 0.0
        %351 = vmatpush.msra.mxu0 0.0
        %352 = vmatpush.msra.mxu0 0.0
        %353 = vmatpush.msra.mxu0 %v305
        %354 = vmatpush.msra.mxu0 %v302
        %355 = vmatmul.f32.gmra.mxu0 %v311
        %v356 = vpop.f32.mrf.mxu0
        %v357 = vadd.f32 0.0, %v356
        %358 = vmatmul.f32.gmra.mxu0 %v314
        %v359 = vpop.f32.mrf.mxu0
        %v360 = vadd.f32 0.0, %v359
        %361 = vdwg.mxu0
        %362 = vmatpush.msra.mxu0 0.0
        %363 = vmatpush.msra.mxu0 0.0
        %364 = vmatpush.msra.mxu0 0.0
        %365 = vmatpush.msra.mxu0 0.0
        %366 = vmatpush.msra.mxu0 0.0
        %367 = vmatpush.msra.mxu0 0.0
        %368 = vmatpush.msra.mxu0 0.0
        %369 = vmatpush.msra.mxu0 0.0
        %370 = vmatpush.msra.mxu0 0.0
        %371 = vmatpush.msra.mxu0 0.0
        %372 = vmatpush.msra.mxu0 0.0
        %373 = vmatpush.msra.mxu0 0.0
        %374 = vmatpush.msra.mxu0 0.0
        %375 = vmatpush.msra.mxu0 0.0
        %376 = vmatpush.msra.mxu0 %v306
        %377 = vmatpush.msra.mxu0 %v303
        %378 = vmatmul.f32.gmra.mxu0 %v311
        %v379 = vpop.f32.mrf.mxu0
        %v380 = vadd.f32 0.0, %v379
        %381 = vmatmul.f32.gmra.mxu0 %v314
        %v382 = vpop.f32.mrf.mxu0
        %v383 = vadd.f32 0.0, %v382
        %384 = vdwg.mxu0
        %v385 = vld [vmem:[#allocation2] sm:$0xff]
        %v386 = vld [vmem:[#allocation2 + $0x8] sm:$0xff]
        %v387 = vld [vmem:[#allocation2 + $0x10] sm:$0xff]
        %v388 = vld [vmem:[#allocation2 + $0x18] sm:$0xff]
        %v389 = vld [vmem:[#allocation2 + $0x20] sm:$0xff]
        %v390 = vld [vmem:[#allocation2 + $0x28] sm:$0xff]
        %v391 = vld [vmem:[#allocation2 + $0x30] sm:$0xff]
        %v392 = vld [vmem:[#allocation2 + $0x38] sm:$0xff]
        %v393 = vld [vmem:[#allocation2 + $0x40] sm:$0xff]
        %v394 = vld [vmem:[#allocation2 + $0x48] sm:$0xff]
        %v395 = vld [vmem:[#allocation2 + $0x50] sm:$0xff]
        %v396 = vld [vmem:[#allocation2 + $0x58] sm:$0xff]
        %v397 = vld [vmem:[#allocation2 + $0x60] sm:$0xff]
        %v398 = vld [vmem:[#allocation2 + $0x68] sm:$0xff]
        %v399 = vld [vmem:[#allocation2 + $0x70] sm:$0xff]
        %v400 = vld [vmem:[#allocation2 + $0x78] sm:$0xff]
        %v401 = vld [vmem:[#allocation2 + $0x80] sm:$0xff]
        %v402 = vld [vmem:[#allocation2 + $0x88] sm:$0xff]
        %v403 = vld [vmem:[#allocation2 + $0x90] sm:$0xff]
        %v404 = vld [vmem:[#allocation2 + $0x98] sm:$0xff]
        %v405 = vld [vmem:[#allocation2 + $0xa0] sm:$0xff]
        %v406 = vld [vmem:[#allocation2 + $0xa8] sm:$0xff]
        %v407 = vld [vmem:[#allocation2 + $0xb0] sm:$0xff]
        %v408 = vld [vmem:[#allocation2 + $0xb8] sm:$0xff]
        %v409 = vld [vmem:[#allocation2 + $0xc0] sm:$0xff]
        %v410 = vld [vmem:[#allocation2 + $0xc8] sm:$0xff]
        %v411 = vld [vmem:[#allocation2 + $0xd0] sm:$0xff]
        %v412 = vld [vmem:[#allocation2 + $0xd8] sm:$0xff]
        %v413 = vld [vmem:[#allocation2 + $0xe0] sm:$0xff]
        %v414 = vld [vmem:[#allocation2 + $0xe8] sm:$0xff]
        %v415 = vld [vmem:[#allocation2 + $0xf0] sm:$0xff]
        %v416 = vld [vmem:[#allocation2 + $0xf8] sm:$0xff]
        %v417 = vld [vmem:[#allocation2 + $0x100] sm:$0xff]
        %v418 = vld [vmem:[#allocation2 + $0x108] sm:$0xff]
        %v419 = vld [vmem:[#allocation2 + $0x110] sm:$0xff]
        %v420 = vld [vmem:[#allocation2 + $0x118] sm:$0xff]
        %v421 = vld [vmem:[#allocation2 + $0x120] sm:$0xff]
        %v422 = vld [vmem:[#allocation2 + $0x128] sm:$0xff]
        %v423 = vld [vmem:[#allocation2 + $0x130] sm:$0xff]
        %v424 = vld [vmem:[#allocation2 + $0x138] sm:$0xff]
        %v425 = vld [vmem:[#allocation2 + $0x140] sm:$0xff]
        %v426 = vld [vmem:[#allocation2 + $0x148] sm:$0xff]
        %v427 = vld [vmem:[#allocation2 + $0x150] sm:$0xff]
        %v428 = vld [vmem:[#allocation2 + $0x158] sm:$0xff]
        %v429 = vld [vmem:[#allocation2 + $0x160] sm:$0xff]
        %v430 = vld [vmem:[#allocation2 + $0x168] sm:$0xff]
        %v431 = vld [vmem:[#allocation2 + $0x170] sm:$0xff]
        %v432 = vld [vmem:[#allocation2 + $0x178] sm:$0xff]
        %v433 = vld [vmem:[#allocation2 + $0x180] sm:$0xff]
        %v434 = vld [vmem:[#allocation2 + $0x188] sm:$0xff]
        %v435 = vld [vmem:[#allocation2 + $0x190] sm:$0xff]
        %v436 = vld [vmem:[#allocation2 + $0x198] sm:$0xff]
        %v437 = vld [vmem:[#allocation2 + $0x1a0] sm:$0xff]
        %v438 = vld [vmem:[#allocation2 + $0x1a8] sm:$0xff]
        %v439 = vld [vmem:[#allocation2 + $0x1b0] sm:$0xff]
        %v440 = vld [vmem:[#allocation2 + $0x1b8] sm:$0xff]
        %v441 = vld [vmem:[#allocation2 + $0x1c0] sm:$0xff]
        %v442 = vld [vmem:[#allocation2 + $0x1c8] sm:$0xff]
        %v443 = vld [vmem:[#allocation2 + $0x1d0] sm:$0xff]
        %v444 = vld [vmem:[#allocation2 + $0x1d8] sm:$0xff]
        %v445 = vld [vmem:[#allocation2 + $0x1e0] sm:$0xff]
        %v446 = vld [vmem:[#allocation2 + $0x1e8] sm:$0xff]
        %v447 = vld [vmem:[#allocation2 + $0x1f0] sm:$0xff]
        %v448 = vld [vmem:[#allocation2 + $0x1f8] sm:$0xff]
        %v449 = vld [vmem:[#allocation2 + $0x200] sm:$0xff]
        %v450 = vld [vmem:[#allocation2 + $0x208] sm:$0xff]
        %v451 = vld [vmem:[#allocation2 + $0x210] sm:$0xff]
        %v452 = vld [vmem:[#allocation2 + $0x218] sm:$0xff]
        %v453 = vld [vmem:[#allocation2 + $0x220] sm:$0xff]
        %v454 = vld [vmem:[#allocation2 + $0x228] sm:$0xff]
        %v455 = vld [vmem:[#allocation2 + $0x230] sm:$0xff]
        %v456 = vld [vmem:[#allocation2 + $0x238] sm:$0xff]
        %v457 = vld [vmem:[#allocation2 + $0x240] sm:$0xff]
        %v458 = vld [vmem:[#allocation2 + $0x248] sm:$0xff]
        %v459 = vld [vmem:[#allocation2 + $0x250] sm:$0xff]
        %v460 = vld [vmem:[#allocation2 + $0x258] sm:$0xff]
        %v461 = vld [vmem:[#allocation2 + $0x260] sm:$0xff]
        %v462 = vld [vmem:[#allocation2 + $0x268] sm:$0xff]
        %v463 = vld [vmem:[#allocation2 + $0x270] sm:$0xff]
        %v464 = vld [vmem:[#allocation2 + $0x278] sm:$0xff]
        %v465 = vld [vmem:[#allocation2 + $0x280] sm:$0xff]
        %v466 = vld [vmem:[#allocation2 + $0x288] sm:$0xff]
        %v467 = vld [vmem:[#allocation2 + $0x290] sm:$0xff]
        %v468 = vld [vmem:[#allocation2 + $0x298] sm:$0xff]
        %v469 = vld [vmem:[#allocation2 + $0x2a0] sm:$0xff]
        %v470 = vld [vmem:[#allocation2 + $0x2a8] sm:$0xff]
        %v471 = vld [vmem:[#allocation2 + $0x2b0] sm:$0xff]
        %v472 = vld [vmem:[#allocation2 + $0x2b8] sm:$0xff]
        %v473 = vld [vmem:[#allocation2 + $0x2c0] sm:$0xff]
        %v474 = vld [vmem:[#allocation2 + $0x2c8] sm:$0xff]
        %v475 = vld [vmem:[#allocation2 + $0x2d0] sm:$0xff]
        %v476 = vld [vmem:[#allocation2 + $0x2d8] sm:$0xff]
        %v477 = vld [vmem:[#allocation2 + $0x2e0] sm:$0xff]
        %v478 = vld [vmem:[#allocation2 + $0x2e8] sm:$0xff]
        %v479 = vld [vmem:[#allocation2 + $0x2f0] sm:$0xff]
        %v480 = vld [vmem:[#allocation2 + $0x2f8] sm:$0xff]
        %v481 = vld [vmem:[#allocation2 + $0x300] sm:$0xff]
        %v482 = vld [vmem:[#allocation2 + $0x308] sm:$0xff]
        %v483 = vld [vmem:[#allocation2 + $0x310] sm:$0xff]
        %v484 = vld [vmem:[#allocation2 + $0x318] sm:$0xff]
        %v485 = vld [vmem:[#allocation2 + $0x320] sm:$0xff]
        %v486 = vld [vmem:[#allocation2 + $0x328] sm:$0xff]
        %v487 = vld [vmem:[#allocation2 + $0x330] sm:$0xff]
        %v488 = vld [vmem:[#allocation2 + $0x338] sm:$0xff]
        %v489 = vld [vmem:[#allocation2 + $0x340] sm:$0xff]
        %v490 = vld [vmem:[#allocation2 + $0x348] sm:$0xff]
        %v491 = vld [vmem:[#allocation2 + $0x350] sm:$0xff]
        %v492 = vld [vmem:[#allocation2 + $0x358] sm:$0xff]
        %v493 = vld [vmem:[#allocation2 + $0x360] sm:$0xff]
        %v494 = vld [vmem:[#allocation2 + $0x368] sm:$0xff]
        %v495 = vld [vmem:[#allocation2 + $0x370] sm:$0xff]
        %v496 = vld [vmem:[#allocation2 + $0x378] sm:$0xff]
        %v497 = vld [vmem:[#allocation2 + $0x380] sm:$0xff]
        %v498 = vld [vmem:[#allocation2 + $0x388] sm:$0xff]
        %v499 = vld [vmem:[#allocation2 + $0x390] sm:$0xff]
        %v500 = vld [vmem:[#allocation2 + $0x398] sm:$0xff]
        %v501 = vld [vmem:[#allocation2 + $0x3a0] sm:$0xff]
        %v502 = vld [vmem:[#allocation2 + $0x3a8] sm:$0xff]
        %v503 = vld [vmem:[#allocation2 + $0x3b0] sm:$0xff]
        %v504 = vld [vmem:[#allocation2 + $0x3b8] sm:$0xff]
        %v505 = vld [vmem:[#allocation2 + $0x3c0] sm:$0xff]
        %v506 = vld [vmem:[#allocation2 + $0x3c8] sm:$0xff]
        %v507 = vld [vmem:[#allocation2 + $0x3d0] sm:$0xff]
        %v508 = vld [vmem:[#allocation2 + $0x3d8] sm:$0xff]
        %v509 = vld [vmem:[#allocation2 + $0x3e0] sm:$0xff]
        %v510 = vld [vmem:[#allocation2 + $0x3e8] sm:$0xff]
        %v511 = vld [vmem:[#allocation2 + $0x3f0] sm:$0xff]
        %v512 = vld [vmem:[#allocation2 + $0x3f8] sm:$0xff]
        %v513 = vld [vmem:[#allocation2 + $0x400] sm:$0xff]
        %v514 = vld [vmem:[#allocation2 + $0x408] sm:$0xff]
        %v515 = vld [vmem:[#allocation2 + $0x410] sm:$0xff]
        %v516 = vld [vmem:[#allocation2 + $0x418] sm:$0xff]
        %v517 = vld [vmem:[#allocation2 + $0x420] sm:$0xff]
        %v518 = vld [vmem:[#allocation2 + $0x428] sm:$0xff]
        %v519 = vld [vmem:[#allocation2 + $0x430] sm:$0xff]
        %v520 = vld [vmem:[#allocation2 + $0x438] sm:$0xff]
        %v521 = vld [vmem:[#allocation2 + $0x440] sm:$0xff]
        %v522 = vld [vmem:[#allocation2 + $0x448] sm:$0xff]
        %v523 = vld [vmem:[#allocation2 + $0x450] sm:$0xff]
        %v524 = vld [vmem:[#allocation2 + $0x458] sm:$0xff]
        %v525 = vld [vmem:[#allocation2 + $0x460] sm:$0xff]
        %v526 = vld [vmem:[#allocation2 + $0x468] sm:$0xff]
        %v527 = vld [vmem:[#allocation2 + $0x470] sm:$0xff]
        %v528 = vld [vmem:[#allocation2 + $0x478] sm:$0xff]
        %529 = vmatpush.msra.mxu0 %v430
        %530 = vmatpush.msra.mxu0 %v427
        %531 = vmatpush.msra.mxu0 %v424
        %532 = vmatpush.msra.mxu0 %v421
        %533 = vmatpush.msra.mxu0 %v418
        %534 = vmatpush.msra.mxu0 %v415
        %535 = vmatpush.msra.mxu0 %v412
        %536 = vmatpush.msra.mxu0 %v409
        %537 = vmatpush.msra.mxu0 %v406
        %538 = vmatpush.msra.mxu0 %v403
        %539 = vmatpush.msra.mxu0 %v400
        %540 = vmatpush.msra.mxu0 %v397
        %541 = vmatpush.msra.mxu0 %v394
        %542 = vmatpush.msra.mxu0 %v391
        %543 = vmatpush.msra.mxu0 %v388
        %544 = vmatpush.msra.mxu0 %v385
        %545 = vmatmul.f32.gmra.mxu0 %v301
        %v546 = vpop.f32.mrf.mxu0
        %v547 = vadd.f32 0.0, %v546
        %548 = vmatmul.f32.gmra.mxu0 %v304
        %v549 = vpop.f32.mrf.mxu0
        %v550 = vadd.f32 0.0, %v549
        %551 = vdwg.mxu0
        %552 = vmatpush.msra.mxu0 %v478
        %553 = vmatpush.msra.mxu0 %v475
        %554 = vmatpush.msra.mxu0 %v472
        %555 = vmatpush.msra.mxu0 %v469
        %556 = vmatpush.msra.mxu0 %v466
        %557 = vmatpush.msra.mxu0 %v463
        %558 = vmatpush.msra.mxu0 %v460
        %559 = vmatpush.msra.mxu0 %v457
        %560 = vmatpush.msra.mxu0 %v454
        %561 = vmatpush.msra.mxu0 %v451
        %562 = vmatpush.msra.mxu0 %v448
        %563 = vmatpush.msra.mxu0 %v445
        %564 = vmatpush.msra.mxu0 %v442
        %565 = vmatpush.msra.mxu0 %v439
        %566 = vmatpush.msra.mxu0 %v436
        %567 = vmatpush.msra.mxu0 %v433
        %568 = vmatmul.f32.gmra.mxu0 %v302
        %v569 = vpop.f32.mrf.mxu0
        %v570 = vadd.f32 %v547, %v569
        %571 = vmatmul.f32.gmra.mxu0 %v305
        %v572 = vpop.f32.mrf.mxu0
        %v573 = vadd.f32 %v550, %v572
        %574 = vdwg.mxu0
        %575 = vmatpush.msra.mxu0 %v526
        %576 = vmatpush.msra.mxu0 %v523
        %577 = vmatpush.msra.mxu0 %v520
        %578 = vmatpush.msra.mxu0 %v517
        %579 = vmatpush.msra.mxu0 %v514
        %580 = vmatpush.msra.mxu0 %v511
        %581 = vmatpush.msra.mxu0 %v508
        %582 = vmatpush.msra.mxu0 %v505
        %583 = vmatpush.msra.mxu0 %v502
        %584 = vmatpush.msra.mxu0 %v499
        %585 = vmatpush.msra.mxu0 %v496
        %586 = vmatpush.msra.mxu0 %v493
        %587 = vmatpush.msra.mxu0 %v490
        %588 = vmatpush.msra.mxu0 %v487
        %589 = vmatpush.msra.mxu0 %v484
        %590 = vmatpush.msra.mxu0 %v481
        %591 = vmatmul.f32.gmra.mxu0 %v303
        %v592 = vpop.f32.mrf.mxu0
        %v593 = vadd.f32 %v570, %v592
        %594 = vmatmul.f32.gmra.mxu0 %v306
        %v595 = vpop.f32.mrf.mxu0
        %v596 = vadd.f32 %v573, %v595
        %597 = vdwg.mxu0
        %598 = vmatpush.msra.mxu0 %v431
        %599 = vmatpush.msra.mxu0 %v428
        %600 = vmatpush.msra.mxu0 %v425
        %601 = vmatpush.msra.mxu0 %v422
        %602 = vmatpush.msra.mxu0 %v419
        %603 = vmatpush.msra.mxu0 %v416
        %604 = vmatpush.msra.mxu0 %v413
        %605 = vmatpush.msra.mxu0 %v410
        %606 = vmatpush.msra.mxu0 %v407
        %607 = vmatpush.msra.mxu0 %v404
        %608 = vmatpush.msra.mxu0 %v401
        %609 = vmatpush.msra.mxu0 %v398
        %610 = vmatpush.msra.mxu0 %v395
        %611 = vmatpush.msra.mxu0 %v392
        %612 = vmatpush.msra.mxu0 %v389
        %613 = vmatpush.msra.mxu0 %v386
        %614 = vmatmul.f32.gmra.mxu0 %v301
        %v615 = vpop.f32.mrf.mxu0
        %v616 = vadd.f32 0.0, %v615
        %617 = vmatmul.f32.gmra.mxu0 %v304
        %v618 = vpop.f32.mrf.mxu0
        %v619 = vadd.f32 0.0, %v618
        %620 = vdwg.mxu0
        %621 = vmatpush.msra.mxu0 %v479
        %622 = vmatpush.msra.mxu0 %v476
        %623 = vmatpush.msra.mxu0 %v473
        %624 = vmatpush.msra.mxu0 %v470
        %625 = vmatpush.msra.mxu0 %v467
        %626 = vmatpush.msra.mxu0 %v464
        %627 = vmatpush.msra.mxu0 %v461
        %628 = vmatpush.msra.mxu0 %v458
        %629 = vmatpush.msra.mxu0 %v455
        %630 = vmatpush.msra.mxu0 %v452
        %631 = vmatpush.msra.mxu0 %v449
        %632 = vmatpush.msra.mxu0 %v446
        %633 = vmatpush.msra.mxu0 %v443
        %634 = vmatpush.msra.mxu0 %v440
        %635 = vmatpush.msra.mxu0 %v437
        %636 = vmatpush.msra.mxu0 %v434
        %637 = vmatmul.f32.gmra.mxu0 %v302
        %v638 = vpop.f32.mrf.mxu0
        %v639 = vadd.f32 %v616, %v638
        %640 = vmatmul.f32.gmra.mxu0 %v305
        %v641 = vpop.f32.mrf.mxu0
        %v642 = vadd.f32 %v619, %v641
        %643 = vdwg.mxu0
        %644 = vmatpush.msra.mxu0 %v527
        %645 = vmatpush.msra.mxu0 %v524
        %646 = vmatpush.msra.mxu0 %v521
        %647 = vmatpush.msra.mxu0 %v518
        %648 = vmatpush.msra.mxu0 %v515
        %649 = vmatpush.msra.mxu0 %v512
        %650 = vmatpush.msra.mxu0 %v509
        %651 = vmatpush.msra.mxu0 %v506
        %652 = vmatpush.msra.mxu0 %v503
        %653 = vmatpush.msra.mxu0 %v500
        %654 = vmatpush.msra.mxu0 %v497
        %655 = vmatpush.msra.mxu0 %v494
        %656 = vmatpush.msra.mxu0 %v491
        %657 = vmatpush.msra.mxu0 %v488
        %658 = vmatpush.msra.mxu0 %v485
        %659 = vmatpush.msra.mxu0 %v482
        %660 = vmatmul.f32.gmra.mxu0 %v303
        %v661 = vpop.f32.mrf.mxu0
        %v662 = vadd.f32 %v639, %v661
        %663 = vmatmul.f32.gmra.mxu0 %v306
        %v664 = vpop.f32.mrf.mxu0
        %v665 = vadd.f32 %v642, %v664
        %666 = vdwg.mxu0
        %667 = vmatpush.msra.mxu0 %v432
        %668 = vmatpush.msra.mxu0 %v429
        %669 = vmatpush.msra.mxu0 %v426
        %670 = vmatpush.msra.mxu0 %v423
        %671 = vmatpush.msra.mxu0 %v420
        %672 = vmatpush.msra.mxu0 %v417
        %673 = vmatpush.msra.mxu0 %v414
        %674 = vmatpush.msra.mxu0 %v411
        %675 = vmatpush.msra.mxu0 %v408
        %676 = vmatpush.msra.mxu0 %v405
        %677 = vmatpush.msra.mxu0 %v402
        %678 = vmatpush.msra.mxu0 %v399
        %679 = vmatpush.msra.mxu0 %v396
        %680 = vmatpush.msra.mxu0 %v393
        %681 = vmatpush.msra.mxu0 %v390
        %682 = vmatpush.msra.mxu0 %v387
        %683 = vmatmul.f32.gmra.mxu0 %v301
        %v684 = vpop.f32.mrf.mxu0
        %v685 = vadd.f32 0.0, %v684
        %686 = vmatmul.f32.gmra.mxu0 %v304
        %v687 = vpop.f32.mrf.mxu0
        %v688 = vadd.f32 0.0, %v687
        %689 = vdwg.mxu0
        %690 = vmatpush.msra.mxu0 %v480
        %691 = vmatpush.msra.mxu0 %v477
        %692 = vmatpush.msra.mxu0 %v474
        %693 = vmatpush.msra.mxu0 %v471
        %694 = vmatpush.msra.mxu0 %v468
        %695 = vmatpush.msra.mxu0 %v465
        %696 = vmatpush.msra.mxu0 %v462
        %697 = vmatpush.msra.mxu0 %v459
        %698 = vmatpush.msra.mxu0 %v456
        %699 = vmatpush.msra.mxu0 %v453
        %700 = vmatpush.msra.mxu0 %v450
        %701 = vmatpush.msra.mxu0 %v447
        %702 = vmatpush.msra.mxu0 %v444
        %703 = vmatpush.msra.mxu0 %v441
        %704 = vmatpush.msra.mxu0 %v438
        %705 = vmatpush.msra.mxu0 %v435
        %706 = vmatmul.f32.gmra.mxu0 %v302
        %v707 = vpop.f32.mrf.mxu0
        %v708 = vadd.f32 %v685, %v707
        %709 = vmatmul.f32.gmra.mxu0 %v305
        %v710 = vpop.f32.mrf.mxu0
        %v711 = vadd.f32 %v688, %v710
        %712 = vdwg.mxu0
        %713 = vmatpush.msra.mxu0 %v528
        %714 = vmatpush.msra.mxu0 %v525
        %715 = vmatpush.msra.mxu0 %v522
        %716 = vmatpush.msra.mxu0 %v519
        %717 = vmatpush.msra.mxu0 %v516
        %718 = vmatpush.msra.mxu0 %v513
        %719 = vmatpush.msra.mxu0 %v510
        %720 = vmatpush.msra.mxu0 %v507
        %721 = vmatpush.msra.mxu0 %v504
        %722 = vmatpush.msra.mxu0 %v501
        %723 = vmatpush.msra.mxu0 %v498
        %724 = vmatpush.msra.mxu0 %v495
        %725 = vmatpush.msra.mxu0 %v492
        %726 = vmatpush.msra.mxu0 %v489
        %727 = vmatpush.msra.mxu0 %v486
        %728 = vmatpush.msra.mxu0 %v483
        %729 = vmatmul.f32.gmra.mxu0 %v303
        %v730 = vpop.f32.mrf.mxu0
        %v731 = vadd.f32 %v708, %v730
        %732 = vmatmul.f32.gmra.mxu0 %v306
        %v733 = vpop.f32.mrf.mxu0
        %v734 = vadd.f32 %v711, %v733
        %735 = vdwg.mxu0
        %v736 = vld [vmem:[%s2] sm:$0xff]
        %v737 = vld [vmem:[%s2 + $0x8] sm:$0xff]
        %739 = vset.pattern.permute.xlu0 0
        %740 = vperm.xlu0 %739, %v736
        %v741 = vpop.permute.xlu0 %740
        %744 = vset.pattern.permute.xlu0 0
        %745 = vperm.xlu0 %744, %v737
        %v746 = vpop.permute.xlu0 %745
        %v748 = vmul.f32 %v741, %v334
        %v749 = vmul.f32 %v741, %v357
        %v750 = vmul.f32 %v741, %v380
        %v751 = vmul.f32 %v746, %v337
        %v752 = vmul.f32 %v746, %v360
        %v753 = vmul.f32 %v746, %v383
        %v754 = vmul.f32 %v301, 3.0
        %v755 = vmul.f32 %v302, 3.0
        %v756 = vmul.f32 %v303, 3.0
        %v757 = vmul.f32 %v304, 3.0
        %v758 = vmul.f32 %v305, 3.0
        %v759 = vmul.f32 %v306, 3.0
        %v760 = vsub.f32 %v748, %v754
        %v761 = vsub.f32 %v749, %v755
        %v762 = vsub.f32 %v750, %v756
        %v763 = vsub.f32 %v751, %v757
        %v764 = vsub.f32 %v752, %v758
        %v765 = vsub.f32 %v753, %v759
        %v766 = vadd.f32 %v760, %v593
        %v767 = vadd.f32 %v761, %v662
        %v768 = vadd.f32 %v762, %v731
        %v769 = vadd.f32 %v763, %v596
        %v770 = vadd.f32 %v764, %v665
        %v771 = vadd.f32 %v765, %v734
        %v772 = vld [vmem:[%s268] sm:$0xff]
        %v773 = vld [vmem:[%s268 + $0x8] sm:$0xff]
        %v774 = vld [vmem:[%s268 + $0x10] sm:$0xff]
        %v775 = vld [vmem:[%s268 + $0x18] sm:$0xff]
        %v776 = vld [vmem:[%s268 + $0x20] sm:$0xff]
        %v777 = vld [vmem:[%s268 + $0x28] sm:$0xff]
        %v778 = vadd.f32 %v766, %v772
        %v779 = vadd.f32 %v767, %v773
        %v780 = vadd.f32 %v768, %v774
        %v781 = vadd.f32 %v769, %v775
        %v782 = vadd.f32 %v770, %v776
        %v783 = vadd.f32 %v771, %v777
        %784 = vst [vmem:[%s300] sm:$0xff] %v778
        %785 = vst [vmem:[%s300 + $0x8] sm:$0xff] %v779
        %786 = vst [vmem:[%s300 + $0x10] sm:$0xff] %v780
        %787 = vst [vmem:[%s300 + $0x18] sm:$0xff] %v781
        %788 = vst [vmem:[%s300 + $0x20] sm:$0xff] %v782
        %789 = vst [vmem:[%s300 + $0x28] sm:$0xff] %v783
        %s790 = sand.u32 %s146, 1
        %s791 = scalar_lea.sflag [#allocation4], %s790
        %s792 = sand.u32 %s146, 1
        %s793 = smul.addr %s792, 48
        %s794 = scalar_lea.vmem [#allocation8], %s793
        // Predicated region
        $region53: #{tpu_custom_call.1} parent=39 // pred_check
          %p795 = pneg %p156
        $region54: #{tpu_custom_call.1} parent=39 // pred_check_branch
          %797 = sbr.rel (%p795) target = $region56
        $region55: #{tpu_custom_call.1} parent=39 // pred_region
          %799 = vsyncadd %s791, 0
          %s800 = smul.addr %s23, 6
          %s801 = smul.addr %s800, 8
          %s802 = scalar_lea.hbm %s5, %s801
          %s803 = sshll.u32 %s794, 4
          %s804 = int_to_ptr.vmem [resolvable:$true] %s803
          %s805 = sshll.u32 %s802, 4
          %s806 = int_to_ptr.hbm [resolvable:$true] %s805
          %811 = dma.vmem_to_hbm [thread:$0]  %s804, 768, %s806, %s791, 384, 384, 24
        $region56: #{tpu_custom_call.1} parent=39 // pred_fallthru
          _
      $region40: #{tpu_custom_call.1} parent=5 // pred_fallthru
        _
      %p812 = scmp.le.s32.totalorder 2, %s18
      // Predicated region
      $region57: #{tpu_custom_call.1} parent=5 // pred_check
        %p813 = pneg %p812
      $region58: #{tpu_custom_call.1} parent=5 // pred_check_branch
        %815 = sbr.rel (%p813) target = $region60
      $region59: #{tpu_custom_call.1} parent=5 // pred_region
        %s816 = ssub.s32 %s18, 2
        // Predicated region
        $region61: #{tpu_custom_call.1} parent=59 // pred_check
          %p817 = pneg %p162
        $region62: #{tpu_custom_call.1} parent=59 // pred_check_branch
          %819 = sbr.rel (%p817) target = $region64
        $region63: #{tpu_custom_call.1} parent=59 // pred_region
          %s820 = sand.u32 %s147, 1
          %s821 = scalar_lea.sflag [#allocation4], %s820
          %s822 = sand.u32 %s147, 1
          %s823 = smul.addr %s822, 48
          %s824 = scalar_lea.vmem [#allocation8], %s823
          %826 = dma.done %s821, 768
        $region64: #{tpu_custom_call.1} parent=59 // pred_fallthru
          _
      $region60: #{tpu_custom_call.1} parent=5 // pred_fallthru
        _
    $region6: #{tpu_custom_call.1} parent=1 // loop_footer
      %s22 = sadd.s32 1, %s18
    $region7: #{tpu_custom_call.1} parent=1 // loop_footer_branch
      %17 = sbr.rel target = $region3
    $region8: #{tpu_custom_call.1} parent=1 // loop_exit
      _
    %827 = vsyncpa [#allocation3], 1
    %s828 = scalar_lea.sflag [#allocation3], 1
    %829 = vsyncpa %s828, 1
    %830 = vsyncpa [#allocation6], 1
    %s831 = scalar_lea.sflag [#allocation6], 1
    %832 = vsyncpa %s831, 1
    %833 = vsyncpa [#allocation4], 1
    %s834 = scalar_lea.sflag [#allocation4], 1
    %835 = vsyncpa %s834, 1

</llo_original>
